<compile_context>
chip_gen: v7x
topology: tpu7x:2x2x1
jax: 0.10.0
libtpu: 0.0.40
codegen_flags: <defaults>
</compile_context>

<pallas_src>
import math

import jax
import jax.numpy as jnp
from jax import lax
from jax.experimental import pallas as pl
from jax.experimental.pallas import tpu as pltpu

_HIGHEST = lax.Precision.HIGHEST


# ---------------------------------------------------------------------------
# Pallas kernel: streamed per-token scores + resident positional/bias row.
# ---------------------------------------------------------------------------
def _meta_ncf_kernel(x_ref, pos_ref, out_ref):
    # x_ref:   (TR, C)  gathered per-token scores  (token_emb @ w_total)[ids]
    # pos_ref: (1,  C)  positional scores + collapsed bias (lane-tiled), VMEM-resident
    # out_ref: (TR, C)  final scores (lane-dense when C == 128)
    out_ref[...] = x_ref[...] + pos_ref[...]


# ---------------------------------------------------------------------------
# Wrapper helpers.
# ---------------------------------------------------------------------------
def _collapse_affine_chain(weights, biases):
    # Compose x W0 + b0 -> ... into a single x W_total + b_total (exact in real arithmetic).
    w_total = weights[0]
    b_total = biases[0]
    for w, b in zip(weights[1:], biases[1:]):
        w_total = jnp.dot(w_total, w, precision=_HIGHEST)
        b_total = jnp.dot(b_total, w, precision=_HIGHEST) + b
    return w_total, b_total                                    # (H, 1), (1, 1)


def _vmem_capacity_bytes():
    try:
        return int(pltpu.get_tpu_info().vmem_capacity_bytes)
    except Exception:                                          # pragma: no cover
        return 64 * 1024 * 1024                                # conservative (v7x per-TC)


def _round_up(x, m):
    return ((x + m - 1) // m) * m


def meta_ncf_forward(inputs, params):
    """inputs: (B, L) int32 item ids; returns x.squeeze() of the (B, L, 1) affine output."""
    emb_table = params["token_emb"]                            # (vocab, H)
    pos_table = params["pos_emb"]                              # (L, H)
    B, L = inputs.shape

    # --- full algebraic collapse: per-vocab score table + per-position score row -----------
    w_total, b_total = _collapse_affine_chain(params["weights"], params["biases"])
    score_table = jnp.dot(emb_table, w_total, precision=_HIGHEST).reshape(-1)      # (vocab,)
    pos_score = (jnp.dot(pos_table, w_total, precision=_HIGHEST).reshape(-1)
                 + b_total.reshape(()))                                            # (L,)

    # --- layout: lane-dense (rows, 128) when possible, (rows, L) fallback otherwise --------
    if 128 % L == 0:
        per_row = 128 // L                                     # batch items per 128-lane row
        C = 128
        pos_row = jnp.tile(pos_score, per_row).reshape(1, C).astype(jnp.float32)
    else:
        per_row = 1
        C = L
        pos_row = pos_score.reshape(1, C).astype(jnp.float32)

    rows_needed = pl.cdiv(B, per_row)

    # --- generation-aware tile sizing (v5e/v6e: 128 MiB VMEM, v7x: 64 MiB per TC) ----------
    vmem_cap = _vmem_capacity_bytes()
    tile_budget = min(vmem_cap // 10, 32 * 1024 * 1024)        # per-buffer tile budget
    tr = max(8, min(tile_budget // (4 * C), 32768))
    tr = (tr // 8) * 8
    tr = min(tr, _round_up(rows_needed, 8))
    rows_pad = _round_up(rows_needed, tr)
    grid_n = rows_pad // tr
    # Prefer >=2 grid steps when there is enough work (v7x has 2 TensorCores to shard onto).
    if grid_n < 2 and rows_needed > 8:
        tr = max(8, ((rows_pad // 2) // 8) * 8)
        rows_pad = _round_up(rows_needed, tr)
        grid_n = rows_pad // tr

    b_pad = rows_pad * per_row

    # --- pad only the tiny int32 ids, gather tiny per-token scalars -------------------------
    if b_pad > B:
        inputs = jnp.pad(inputs, ((0, b_pad - B), (0, 0)))     # index 0 is a valid item id
    gathered = jnp.take(score_table, inputs.reshape(-1), axis=0)
    gathered = gathered.reshape(rows_pad, C).astype(jnp.float32)

    tile_bytes = tr * C * 4
    vmem_needed = 4 * tile_bytes + 2 * C * 4 + (2 << 20)       # dbl-buffered in+out, pos, slack
    vmem_limit = int(min(max(vmem_needed, 16 * 1024 * 1024), max(vmem_cap // 2, vmem_needed)))

    out = pl.pallas_call(
        _meta_ncf_kernel,
        out_shape=jax.ShapeDtypeStruct((rows_pad, C), jnp.float32),
        grid=(grid_n,),
        in_specs=[
            pl.BlockSpec((tr, C), lambda i: (i, 0)),           # streamed per-token scores
            pl.BlockSpec((1, C), lambda i: (0, 0)),            # resident positional row
        ],
        out_specs=pl.BlockSpec((tr, C), lambda i: (i, 0)),     # lane-dense store
        compiler_params=pltpu.CompilerParams(
            dimension_semantics=("parallel",),
            vmem_limit_bytes=vmem_limit,
        ),
    )(gathered, pos_row)

    scores = out.reshape(b_pad, L)[:B]                          # drop padded batch rows
    # torch's x.squeeze() on (B, L, 1): (B, L) for B>1, (L,) for B==1, etc.
    return jnp.squeeze(scores)


# ---------------------------------------------------------------------------
# Deterministic parameter construction (mirrors MetaNCF.__init__ shapes).
# ---------------------------------------------------------------------------
def init_params(key, num_items, max_seq_len, hidden):
    max_len = max_seq_len - 1
    vocab_size = num_items + 2
    n_layers = int(math.log(hidden, 2))

    keys = jax.random.split(key, 2 + 2 * n_layers)
    token_emb = jax.random.normal(keys[0], (vocab_size, hidden), jnp.float32) * 0.02
    pos_emb = jax.random.normal(keys[1], (max_len, hidden), jnp.float32) * 0.02

    weights, biases = [], []
    cur = hidden
    for i in range(n_layers):
        out = cur // 2
        # PyTorch MetaLinearLayer weight is (out, in); store transposed (in, out).
        bound = 1.0 / math.sqrt(cur)
        w = jax.random.uniform(keys[2 + 2 * i], (cur, out), jnp.float32,
                               minval=-bound, maxval=bound)
        b = jax.random.uniform(keys[3 + 2 * i], (1, out), jnp.float32,
                               minval=-bound, maxval=bound)
        weights.append(w)
        biases.append(b)
        cur = out

    return {
        "token_emb": token_emb,
        "pos_emb": pos_emb,
        "weights": weights,
        "biases": biases,
    }


# ---------------------------------------------------------------------------
# Pure-JAX layer-by-layer reference for correctness checking.
# ---------------------------------------------------------------------------
def reference_forward(inputs, params):
    x = jnp.take(params["token_emb"], inputs, axis=0) + params["pos_emb"][None, :, :]
    for w, b in zip(params["weights"], params["biases"]):
        x = jnp.matmul(x, w, precision=_HIGHEST) + b
    return jnp.squeeze(x)


if __name__ == "__main__":
    # Small, module-consistent shapes: batch=2, max_seq_len=9 (-> L=8), hidden=32.
    BATCH = 2
    MAX_SEQ_LEN = 9
    NUM_ITEMS = 100
    HIDDEN = 32

    key = jax.random.PRNGKey(0)
    pkey, ikey = jax.random.split(key)
    params = init_params(pkey, NUM_ITEMS, MAX_SEQ_LEN, HIDDEN)

    L = MAX_SEQ_LEN - 1
    inputs = jax.random.randint(ikey, (BATCH, L), 0, NUM_ITEMS + 2, dtype=jnp.int32)

    out = jax.block_until_ready(meta_ncf_forward(inputs, params))
    ref = jax.block_until_ready(reference_forward(inputs, params))

    assert out.shape == (BATCH, L), out.shape
    assert jnp.allclose(out, ref, atol=1e-5, rtol=1e-4), (out, ref)

    print("KERNEL_OK")
</pallas_src>

<mosaic_0001>
module attributes {stable_mosaic.version = 11 : i64} {
  func.func @_meta_ncf_kernel(%arg0: i32, %arg1: memref<8x128xf32, #tpu.memory_space<vmem>>, %arg2: memref<1x128xf32, #tpu.memory_space<vmem>>, %arg3: memref<8x128xf32, #tpu.memory_space<vmem>>) attributes {dimension_semantics = [#tpu.dimension_semantics<parallel>], iteration_bounds = array<i64: 1>, scalar_prefetch = 0 : i64, scratch_operands = 0 : i64, tpu.core_type = #tpu.core_type<tc>, window_params = [{transform_indices = @transform_0, window_bounds = array<i64: 8, 128>}, {pipeline_mode = #tpu.pipeline_mode<synchronous>, transform_indices = @transform_1, window_bounds = array<i64: 1, 128>}, {transform_indices = @transform_2, window_bounds = array<i64: 8, 128>}]} {
    %c0 = arith.constant 0 : index
    %c0_0 = arith.constant 0 : index
    %0 = vector.load %arg1[%c0, %c0_0] : memref<8x128xf32, #tpu.memory_space<vmem>>, vector<8x128xf32>
    %c0_1 = arith.constant 0 : index
    %c0_2 = arith.constant 0 : index
    %1 = vector.load %arg2[%c0_1, %c0_2] : memref<1x128xf32, #tpu.memory_space<vmem>>, vector<1x128xf32>
    %2 = vector.broadcast %1 : vector<1x128xf32> to vector<8x128xf32>
    %3 = arith.addf %0, %2 : vector<8x128xf32>
    %c0_3 = arith.constant 0 : index
    %c0_4 = arith.constant 0 : index
    %4 = vector.load %arg3[%c0_3, %c0_4] : memref<8x128xf32, #tpu.memory_space<vmem>>, vector<8x128xf32>
    tpu.vector_store %arg3[%c0_3, %c0_4], %3 {strides = array<i32>} : memref<8x128xf32, #tpu.memory_space<vmem>>, vector<8x128xf32>,
    return
  }
  func.func @transform_0(%arg0: i32) -> (i32, i32) {
    %c0_i32 = arith.constant 0 : i32
    %c0_i32_0 = arith.constant 0 : i32
    return %arg0, %c0_i32 : i32, i32
  }
  func.func @transform_1(%arg0: i32) -> (i32, i32) {
    %c0_i32 = arith.constant 0 : i32
    %c0_i32_0 = arith.constant 0 : i32
    %c0_i32_1 = arith.constant 0 : i32
    return %c0_i32, %c0_i32_0 : i32, i32
  }
  func.func @transform_2(%arg0: i32) -> (i32, i32) {
    %c0_i32 = arith.constant 0 : i32
    %c0_i32_0 = arith.constant 0 : i32
    return %arg0, %c0_i32 : i32, i32
  }
}

</mosaic_0001>

<llo_original>
// kernel: tpu_custom_call.1
$region0: #{tpu_custom_call.1}
  #allocation0 [shape = 'u32[]', space=smem, size = 0x4, offset = 0x4, fixed_abs, tag = 'smem constant byte address 0x4 - core index']
  #allocation1 [shape = 'u32[144,128]{1,0:T(1,128)}', space=vmem, size = 0x12000, scoped, tag = 'internal scratch']
  %s0 = inlined_call_operand.hbm [shape: f32[8,128], index: 0, kind: input, shape index: {}]
  %s1 = inlined_call_operand.vmem [shape: f32[1,128], index: 1, kind: input, shape index: {}]
  %s2 = inlined_call_operand.hbm [shape: f32[8,128], index: 2, kind: output, shape index: {}]
  %s3 = sld [smem:[#allocation0]]
  $region22: #{tpu_custom_call.1} parent=0
    _
  %s5 = ssub.s32 1, %s3
  %s6 = scalar_select 0, %s5, %s3
  $region1: #{tpu_custom_call.1} parent=0
    #allocation2 [shape = 'u8[4096]{0}', space=vmem, size = 0x1000, scoped, tag = 'input window, operand 0, single buffered']
    #allocation3 [shape = 's32[1]{0}', space=sflag, size = 0x4, scoped, tag = 'scoped memory for tpu_custom_call.1']
    #allocation4 [shape = 's32[1]{0}', space=sflag, size = 0x4, scoped, tag = 'scoped memory for tpu_custom_call.1']
    #allocation5 [shape = 'u8[4096]{0}', space=vmem, size = 0x1000, scoped, tag = 'output window, operand 0, single buffered']
    %7 = vsyncpa [#allocation3], 0
    %8 = vsyncpa [#allocation4], 0
    // Predicated region
    $region2: #{tpu_custom_call.1} parent=1 // pred_check
      _
    $region3: #{tpu_custom_call.1} parent=1 // pred_check_branch
      %10 = sbr.rel (0) target = $region5
    $region4: #{tpu_custom_call.1} parent=1 // pred_region
      %s12 = ssub.s32 128, 128
      %13 = vsyncadd [#allocation3], %s12
      %s15 = sshll.u32 [#allocation2], 4
      %s16 = int_to_ptr.vmem [resolvable:$true] %s15
      %18 = dma.hbm_to_vmem [thread:$0]  %s0, 128, %s16, [#allocation3]
    $region5: #{tpu_custom_call.1} parent=1 // pred_fallthru
      _
    // Predicated region
    $region6: #{tpu_custom_call.1} parent=1 // pred_check
      _
    $region7: #{tpu_custom_call.1} parent=1 // pred_check_branch
      %20 = sbr.rel (0) target = $region9
    $region8: #{tpu_custom_call.1} parent=1 // pred_region
      _
    $region9: #{tpu_custom_call.1} parent=1 // pred_fallthru
      _
    // Predicated region
    $region10: #{tpu_custom_call.1} parent=1 // pred_check
      _
    $region11: #{tpu_custom_call.1} parent=1 // pred_check_branch
      %22 = sbr.rel (0) target = $region13
    $region12: #{tpu_custom_call.1} parent=1 // pred_region
      %23 = dma.done [#allocation3], 128
    $region13: #{tpu_custom_call.1} parent=1 // pred_fallthru
      _
    %v24 = vld [vmem:[#allocation2] sm:$0xff]
    %v25 = vld [vmem:[%s1] sm:$0x1]
    %v27 = vlaneseq
    %v28 = vshrl.u32 %v27, 7
    %v29 = vsub.s32 0, %v28
    %v30 = vrot.slane %v25, %v29
    %v32 = vadd.f32 %v24, %v30
    %33 = vst [vmem:[#allocation5] sm:$0xff] %v32
    // Predicated region
    $region14: #{tpu_custom_call.1} parent=1 // pred_check
      _
    $region15: #{tpu_custom_call.1} parent=1 // pred_check_branch
      %35 = sbr.rel (0) target = $region17
    $region16: #{tpu_custom_call.1} parent=1 // pred_region
      %s37 = ssub.s32 128, 128
      %38 = vsyncadd [#allocation4], %s37
      %s40 = sshll.u32 [#allocation5], 4
      %s41 = int_to_ptr.vmem [resolvable:$true] %s40
      %43 = dma.vmem_to_hbm [thread:$0]  %s41, 128, %s2, [#allocation4]
    $region17: #{tpu_custom_call.1} parent=1 // pred_fallthru
      _
    // Predicated region
    $region18: #{tpu_custom_call.1} parent=1 // pred_check
      _
    $region19: #{tpu_custom_call.1} parent=1 // pred_check_branch
      %45 = sbr.rel (0) target = $region21
    $region20: #{tpu_custom_call.1} parent=1 // pred_region
      %46 = dma.done [#allocation4], 128
    $region21: #{tpu_custom_call.1} parent=1 // pred_fallthru
      _
    %47 = vsyncpa [#allocation3], 1
    %48 = vsyncpa [#allocation4], 1

</llo_original>
